<compile_context>
chip_gen: v6e
topology: v6e:2x2x1
jax: 0.10.0
libtpu: 0.0.40
codegen_flags: <defaults>
</compile_context>

<pallas_src>
import math

import jax
import jax.numpy as jnp
from jax.experimental import pallas as pl
from jax.experimental.pallas import tpu as pltpu


def _round_up(x: int, m: int) -> int:
    return ((x + m - 1) // m) * m


def _pick_block_rows(width: int) -> int:
    """Rows per grid step, targeting a ~2 MiB f32 output block.

    Big enough to amortize the ~0.35 us/step pipeline overhead (mem-bound
    roofline is ~85% at >=1 MiB tiles), small enough that the double-buffered
    output block plus the tiny inputs stays far below the scoped-VMEM defaults
    on v5e (16 MiB) / v6e (32 MiB) / v7x (32 MiB of 64 MiB physical).
    """
    rows = (2 * 1024 * 1024) // (4 * width)
    rows = (rows // 16) * 16
    return max(16, min(4096, rows))


def _sinusoidal_kernel(time_ref, gfreqs_ref, phase_ref, out_ref):
    # time_ref  : (TB, k)  f32 -- k timesteps packed per output row (k == 1 unpacked)
    # gfreqs_ref: (k, W)   f32 -- row g holds [freqs, freqs] in lanes
    #                             [g*dim, (g+1)*dim), exact zeros elsewhere
    # phase_ref : (1, W)   f32 -- 0 on sin lanes, pi/2 on cos lanes
    # out_ref   : (TB, W)
    #
    # args[r, g*dim + c] = time[r, g] * freqs_full[c] + phase_full[c], built with
    # k VPU broadcast multiply-adds (masked-off groups contribute exact zeros),
    # followed by ONE full-width sin and one lane-dense store.  No XLU shuffles,
    # no masked partial stores.
    k = gfreqs_ref.shape[0]
    t = time_ref[...]
    args = t[:, 0:1] * gfreqs_ref[0:1, :]
    for g in range(1, k):                       # static unroll, k <= 32
        args = args + t[:, g:g + 1] * gfreqs_ref[g:g + 1, :]
    out_ref[...] = jnp.sin(args + phase_ref[...]).astype(out_ref.dtype)


def sinusoidal_position_embeddings(time: jax.Array, dim: int, *,
                                   out_dtype=jnp.float32,
                                   block_rows: int | None = None) -> jax.Array:
    """Pallas equivalent of SinusoidalPositionEmbeddings(dim)(time)."""
    assert time.ndim == 1, "time must be a 1-D vector of timesteps"
    assert dim % 2 == 0 and dim >= 4, "dim must be even and >= 4"

    b = time.shape[0]
    half = dim // 2

    # Trace-time constants (same f32 ops as the reference so freqs match exactly).
    scale = math.log(10000.0) / (half - 1)
    freqs = jnp.exp(jnp.arange(half, dtype=jnp.float32) * -scale)           # (half,)
    freqs_full = jnp.concatenate([freqs, freqs])                             # (dim,)
    phase_full = jnp.concatenate(
        [jnp.zeros((half,), jnp.float32),
         jnp.full((half,), math.pi / 2, dtype=jnp.float32)])                 # (dim,)

    # Lane-dense repack: pack k = 128//dim rows per 128-lane output row so every
    # vector store is unmasked/full-width (the biggest lever for widths < 128).
    k = 1
    if dim < 128 and 128 % dim == 0 and b % (128 // dim) == 0:
        k = 128 // dim
    width = k * dim

    if k > 1:
        eye = jnp.eye(k, dtype=jnp.float32)
        gfreqs = (eye[:, :, None] * freqs_full[None, None, :]).reshape(k, width)
        phase = jnp.tile(phase_full, k)[None, :]                             # (1, width)
        time_in = time.astype(jnp.float32).reshape(b // k, k)
    else:
        gfreqs = freqs_full[None, :]
        phase = phase_full[None, :]
        time_in = time.astype(jnp.float32).reshape(b, 1)

    rows_total = time_in.shape[0]
    out_shape = jax.ShapeDtypeStruct((rows_total, width), out_dtype)

    if block_rows is None:
        block_rows = _pick_block_rows(width)
    else:
        block_rows = max(16, _round_up(block_rows, 16))

    grid = pl.cdiv(rows_total, block_rows)
    if grid > 1:
        # Pipelined path: pl.cdiv handles a ragged last block, so *every* large
        # input lands here and the no-grid fallback below can never blow VMEM.
        # Nudge towards an even grid so v7x's two TensorCores split the
        # "parallel" axis evenly (no-op on single-TC v5e/v6e).
        target_grid = grid + (grid % 2)
        block_rows = min(block_rows,
                         _round_up(pl.cdiv(rows_total, target_grid), 16))
        grid = pl.cdiv(rows_total, block_rows)

        out = pl.pallas_call(
            _sinusoidal_kernel,
            out_shape=out_shape,
            grid=(grid,),
            in_specs=[
                pl.BlockSpec((block_rows, k), lambda i: (i, 0)),      # time
                pl.BlockSpec((k, width), lambda i: (0, 0)),           # grouped freqs
                pl.BlockSpec((1, width), lambda i: (0, 0)),           # phase
            ],
            # TODO(synk): if xprof shows exposed output writeback, sweep
            # pipeline_mode=pl.Buffered(3) on out_specs (output is the only
            # heavy DMA direction; don't commit without a measured delta).
            out_specs=pl.BlockSpec((block_rows, width), lambda i: (i, 0)),
            compiler_params=pltpu.CompilerParams(
                dimension_semantics=("parallel",)),
        )(time_in, gfreqs, phase)
    else:
        # Small inputs (the common diffusion case): single block, no grid -> no
        # per-step pipeline overhead; everything (<= ~2 MiB) lives in VMEM.
        # TODO(synk): at b of a few hundred this is launch-dominated; fusing the
        # embedding into the consumer time-MLP kernel would remove the HBM
        # round trip of the (b, dim) tensor entirely.
        out = pl.pallas_call(_sinusoidal_kernel, out_shape=out_shape)(
            time_in, gfreqs, phase)

    if k > 1:
        out = out.reshape(b, dim)       # contiguous row-major unpack: free
    return out


def _reference(time: jax.Array, dim: int) -> jax.Array:
    half_dim = dim // 2
    emb = math.log(10000.0) / (half_dim - 1)
    emb = jnp.exp(jnp.arange(half_dim, dtype=jnp.float32) * -emb)
    emb = time.astype(jnp.float32)[:, None] * emb[None, :]
    return jnp.concatenate([jnp.sin(emb), jnp.cos(emb)], axis=-1)


if __name__ == "__main__":
    key = jax.random.PRNGKey(0)
    batch, dim = 8, 32
    time = jax.random.uniform(key, (batch,), jnp.float32, minval=0.0, maxval=1000.0)

    # Lane-packed (k = 128//dim = 4), single-block path.
    out = jax.block_until_ready(sinusoidal_position_embeddings(time, dim))
    ref = _reference(time, dim)
    assert out.shape == (batch, dim)
    assert out.dtype == jnp.float32
    # cos(x) = sin(x + pi/2): rounding of (x + pi/2) at |x| ~ 1e3 costs up to
    # ~6e-5 absolute on the cos half -> compare with atol=3e-4.
    assert jnp.allclose(out, ref, atol=3e-4), "packed path mismatch vs reference"

    # Unpacked (k = 1) path: dim that does not divide the 128-lane width.
    out20 = jax.block_until_ready(sinusoidal_position_embeddings(time, 20))
    assert jnp.allclose(out20, _reference(time, 20), atol=3e-4), "unpacked path mismatch"

    # Pipelined grid path with a ragged last block (tiny forced block for the test).
    time_l = jax.random.uniform(jax.random.PRNGKey(1), (104,), jnp.float32,
                                minval=0.0, maxval=1000.0)
    out_l = jax.block_until_ready(
        sinusoidal_position_embeddings(time_l, dim, block_rows=16))
    assert jnp.allclose(out_l, _reference(time_l, dim), atol=3e-4), "grid path mismatch"

    print("KERNEL_OK")
</pallas_src>

<mosaic_0001>
module attributes {stable_mosaic.version = 11 : i64} {
  func.func @_sinusoidal_kernel(%arg0: memref<2x4xf32, #tpu.memory_space<vmem>>, %arg1: memref<4x128xf32, #tpu.memory_space<vmem>>, %arg2: memref<1x128xf32, #tpu.memory_space<vmem>>, %arg3: memref<2x128xf32, #tpu.memory_space<vmem>>) attributes {dimension_semantics = [], scalar_prefetch = 0 : i64, scratch_operands = 0 : i64, tpu.core_type = #tpu.core_type<tc>} {
    %c0 = arith.constant 0 : index
    %c0_0 = arith.constant 0 : index
    %0 = vector.load %arg0[%c0, %c0_0] : memref<2x4xf32, #tpu.memory_space<vmem>>, vector<2x4xf32>
    %1 = vector.extract_strided_slice %0 {offsets = [0, 0], sizes = [2, 1], strides = [1, 1]} : vector<2x4xf32> to vector<2x1xf32>
    %c0_1 = arith.constant 0 : index
    %c0_2 = arith.constant 0 : index
    %2 = vector.load %arg1[%c0_1, %c0_2] : memref<4x128xf32, #tpu.memory_space<vmem>>, vector<1x128xf32>
    %3 = vector.broadcast %1 : vector<2x1xf32> to vector<2x128xf32>
    %4 = vector.broadcast %2 : vector<1x128xf32> to vector<2x128xf32>
    %5 = arith.mulf %3, %4 : vector<2x128xf32>
    %6 = vector.extract_strided_slice %0 {offsets = [0, 1], sizes = [2, 1], strides = [1, 1]} : vector<2x4xf32> to vector<2x1xf32>
    %c1 = arith.constant 1 : index
    %c0_3 = arith.constant 0 : index
    %7 = vector.load %arg1[%c1, %c0_3] : memref<4x128xf32, #tpu.memory_space<vmem>>, vector<1x128xf32>
    %8 = vector.broadcast %6 : vector<2x1xf32> to vector<2x128xf32>
    %9 = vector.broadcast %7 : vector<1x128xf32> to vector<2x128xf32>
    %10 = arith.mulf %8, %9 : vector<2x128xf32>
    %11 = arith.addf %5, %10 : vector<2x128xf32>
    %12 = vector.extract_strided_slice %0 {offsets = [0, 2], sizes = [2, 1], strides = [1, 1]} : vector<2x4xf32> to vector<2x1xf32>
    %c2 = arith.constant 2 : index
    %c0_4 = arith.constant 0 : index
    %13 = vector.load %arg1[%c2, %c0_4] : memref<4x128xf32, #tpu.memory_space<vmem>>, vector<1x128xf32>
    %14 = vector.broadcast %12 : vector<2x1xf32> to vector<2x128xf32>
    %15 = vector.broadcast %13 : vector<1x128xf32> to vector<2x128xf32>
    %16 = arith.mulf %14, %15 : vector<2x128xf32>
    %17 = arith.addf %11, %16 : vector<2x128xf32>
    %18 = vector.extract_strided_slice %0 {offsets = [0, 3], sizes = [2, 1], strides = [1, 1]} : vector<2x4xf32> to vector<2x1xf32>
    %c3 = arith.constant 3 : index
    %c0_5 = arith.constant 0 : index
    %19 = vector.load %arg1[%c3, %c0_5] : memref<4x128xf32, #tpu.memory_space<vmem>>, vector<1x128xf32>
    %20 = vector.broadcast %18 : vector<2x1xf32> to vector<2x128xf32>
    %21 = vector.broadcast %19 : vector<1x128xf32> to vector<2x128xf32>
    %22 = arith.mulf %20, %21 : vector<2x128xf32>
    %23 = arith.addf %17, %22 : vector<2x128xf32>
    %c0_6 = arith.constant 0 : index
    %c0_7 = arith.constant 0 : index
    %24 = vector.load %arg2[%c0_6, %c0_7] : memref<1x128xf32, #tpu.memory_space<vmem>>, vector<1x128xf32>
    %25 = vector.broadcast %24 : vector<1x128xf32> to vector<2x128xf32>
    %26 = arith.addf %23, %25 : vector<2x128xf32>
    %27 = math.sin %26 : vector<2x128xf32>
    %c0_8 = arith.constant 0 : index
    %c0_9 = arith.constant 0 : index
    %28 = vector.load %arg3[%c0_8, %c0_9] : memref<2x128xf32, #tpu.memory_space<vmem>>, vector<2x128xf32>
    tpu.vector_store %arg3[%c0_8, %c0_9], %27 {strides = array<i32>} : memref<2x128xf32, #tpu.memory_space<vmem>>, vector<2x128xf32>,
    return
  }
}

</mosaic_0001>

<llo_original>
// kernel: tpu_custom_call.1
$region0: #{tpu_custom_call.1}
  #allocation0 [shape = 'u32[]', space=smem, size = 0x4, offset = 0x4, fixed_abs, tag = 'smem constant byte address 0x4 - core index']
  #allocation1 [shape = 'u32[144,128]{1,0:T(1,128)}', space=vmem, size = 0x12000, scoped, tag = 'internal scratch']
  %s0 = inlined_call_operand.hbm [shape: f32[2,4], index: 0, kind: input, shape index: {}]
  %s1 = inlined_call_operand.hbm [shape: f32[4,128], index: 1, kind: input, shape index: {}]
  %s2 = inlined_call_operand.vmem [shape: f32[1,128], index: 2, kind: input, shape index: {}]
  %s3 = inlined_call_operand.hbm [shape: f32[2,128], index: 3, kind: output, shape index: {}]
  %s4 = sld [smem:[#allocation0]]
  $region30: #{tpu_custom_call.1} parent=0
    _
  %s6 = ssub.s32 1, %s4
  %s7 = scalar_select 0, %s6, %s4
  $region1: #{tpu_custom_call.1} parent=0
    #allocation2 [shape = 'u8[1024]{0}', space=vmem, size = 0x400, scoped, tag = 'input window, operand 0, single buffered']
    #allocation3 [shape = 's32[1]{0}', space=sflag, size = 0x4, scoped, tag = 'scoped memory for tpu_custom_call.1']
    #allocation4 [shape = 's32[1]{0}', space=sflag, size = 0x4, scoped, tag = 'scoped memory for tpu_custom_call.1']
    #allocation5 [shape = 'u8[2048]{0}', space=vmem, size = 0x800, scoped, tag = 'input window, operand 1, single buffered']
    #allocation6 [shape = 's32[1]{0}', space=sflag, size = 0x4, scoped, tag = 'scoped memory for tpu_custom_call.1']
    #allocation7 [shape = 'u8[1024]{0}', space=vmem, size = 0x400, scoped, tag = 'output window, operand 0, single buffered']
    %8 = vsyncpa [#allocation3], 0
    %9 = vsyncpa [#allocation6], 0
    %10 = vsyncpa [#allocation4], 0
    // Predicated region
    $region2: #{tpu_custom_call.1} parent=1 // pred_check
      _
    $region3: #{tpu_custom_call.1} parent=1 // pred_check_branch
      %12 = sbr.rel (0) target = $region5
    $region4: #{tpu_custom_call.1} parent=1 // pred_region
      %s14 = ssub.s32 32, 32
      %15 = vsyncadd [#allocation3], %s14
      %s17 = sshll.u32 [#allocation2], 4
      %s18 = int_to_ptr.vmem [resolvable:$true] %s17
      %20 = dma.hbm_to_vmem [thread:$0]  %s0, 32, %s18, [#allocation3]
    $region5: #{tpu_custom_call.1} parent=1 // pred_fallthru
      _
    // Predicated region
    $region6: #{tpu_custom_call.1} parent=1 // pred_check
      _
    $region7: #{tpu_custom_call.1} parent=1 // pred_check_branch
      %22 = sbr.rel (0) target = $region9
    $region8: #{tpu_custom_call.1} parent=1 // pred_region
      %s24 = ssub.s32 64, 64
      %25 = vsyncadd [#allocation6], %s24
      %s27 = sshll.u32 [#allocation5], 4
      %s28 = int_to_ptr.vmem [resolvable:$true] %s27
      %30 = dma.hbm_to_vmem [thread:$0]  %s1, 64, %s28, [#allocation6]
    $region9: #{tpu_custom_call.1} parent=1 // pred_fallthru
      _
    // Predicated region
    $region10: #{tpu_custom_call.1} parent=1 // pred_check
      _
    $region11: #{tpu_custom_call.1} parent=1 // pred_check_branch
      %32 = sbr.rel (0) target = $region13
    $region12: #{tpu_custom_call.1} parent=1 // pred_region
      _
    $region13: #{tpu_custom_call.1} parent=1 // pred_fallthru
      _
    // Predicated region
    $region14: #{tpu_custom_call.1} parent=1 // pred_check
      _
    $region15: #{tpu_custom_call.1} parent=1 // pred_check_branch
      %34 = sbr.rel (0) target = $region17
    $region16: #{tpu_custom_call.1} parent=1 // pred_region
      %35 = dma.done [#allocation3], 32
    $region17: #{tpu_custom_call.1} parent=1 // pred_fallthru
      _
    // Predicated region
    $region18: #{tpu_custom_call.1} parent=1 // pred_check
      _
    $region19: #{tpu_custom_call.1} parent=1 // pred_check_branch
      %37 = sbr.rel (0) target = $region21
    $region20: #{tpu_custom_call.1} parent=1 // pred_region
      %38 = dma.done [#allocation6], 64
    $region21: #{tpu_custom_call.1} parent=1 // pred_fallthru
      _
    %v39 = vld [vmem:[#allocation2] sm:$0x3]
    %v40 = vld [vmem:[#allocation5] sm:$0x1]
    %42 = vset.pattern.permute.xlu0 0
    %43 = vperm.xlu0 %42, %v39
    %v44 = vpop.permute.xlu0 %43
    %v46 = vlaneseq
    %v47 = vshrl.u32 %v46, 7
    %v48 = vsub.s32 0, %v47
    %v49 = vrot.slane %v40, %v48
    %v50 = vmul.f32 %v44, %v49
    %v51 = vld [vmem:[#allocation5 + $0x1] sm:$0x1]
    %52 = vset.pattern.permute.xlu0 1
    %53 = vperm.xlu0 %52, %v39
    %v54 = vpop.permute.xlu0 %53
    %v56 = vlaneseq
    %v57 = vshrl.u32 %v56, 7
    %v58 = vsub.s32 0, %v57
    %v59 = vrot.slane %v51, %v58
    %v60 = vmul.f32 %v54, %v59
    %v61 = vadd.f32 %v50, %v60
    %v62 = vld [vmem:[#allocation5 + $0x2] sm:$0x1]
    %63 = vset.pattern.permute.xlu0 2
    %64 = vperm.xlu0 %63, %v39
    %v65 = vpop.permute.xlu0 %64
    %v67 = vlaneseq
    %v68 = vshrl.u32 %v67, 7
    %v69 = vsub.s32 0, %v68
    %v70 = vrot.slane %v62, %v69
    %v71 = vmul.f32 %v65, %v70
    %v72 = vadd.f32 %v61, %v71
    %v73 = vld [vmem:[#allocation5 + $0x3] sm:$0x1]
    %74 = vset.pattern.permute.xlu0 3
    %75 = vperm.xlu0 %74, %v39
    %v76 = vpop.permute.xlu0 %75
    %v78 = vlaneseq
    %v79 = vshrl.u32 %v78, 7
    %v80 = vsub.s32 0, %v79
    %v81 = vrot.slane %v73, %v80
    %v82 = vmul.f32 %v76, %v81
    %v83 = vadd.f32 %v72, %v82
    %v84 = vld [vmem:[%s2] sm:$0x1]
    %v86 = vlaneseq
    %v87 = vshrl.u32 %v86, 7
    %v88 = vsub.s32 0, %v87
    %v89 = vrot.slane %v84, %v88
    %v91 = vadd.f32 %v83, %v89
    %v92 = vand.u32 2147483647, %v91
    %vm93 = vcmp.le.f32.partialorder %v92, 0.7853982
    %vm94 = vcmp.lt.s32.totalorder %v91, 0
    %v95 = vand.u32 %v91, 2139095040
    %v96 = vshrl.u32 %v95, 23
    %v97 = vsub.s32 %v96, 127
    %v98 = vand.u32 2147483647, %v91
    %v99 = vand.u32 %v98, 8388607
    %v100 = vor.u32 %v99, 8388608
    %v101 = vsub.s32 0, %v100
    %v102 = vadd.s32 %v97, 1
    %vm103 = vcmp.gt.s32.totalorder %v102, 0
    %v104 = vsel %vm103, %v102, 0
    %v105 = vshrl.u32 %v104, 5
    %v106 = vand.u32 %v104, 31
    %v107 = vsub.s32 32, %v106
    %v108 = vshrl.u32 683565275, %v107
    %v109 = vshll.u32 683565275, %v106
    %v110 = vshrl.u32 2475754826, %v107
    %v111 = vor.u32 %v109, %v110
    %v112 = vshll.u32 2475754826, %v106
    %v113 = vshrl.u32 2131351028, %v107
    %v114 = vor.u32 %v112, %v113
    %v115 = vshll.u32 2131351028, %v106
    %v116 = vshrl.u32 2102212464, %v107
    %v117 = vor.u32 %v115, %v116
    %v118 = vshll.u32 2102212464, %v106
    %v119 = vshrl.u32 920167782, %v107
    %v120 = vor.u32 %v118, %v119
    %v121 = vshll.u32 920167782, %v106
    %v122 = vshrl.u32 1326507024, %v107
    %v123 = vor.u32 %v121, %v122
    %vm124 = vcmp.lt.s32.totalorder %v105, 1
    %vm125 = vcmp.lt.s32.totalorder %v105, 2
    %vm126 = vcmp.lt.s32.totalorder %v105, 3
    %vm127 = vcmp.lt.s32.totalorder %v105, 4
    %v128 = vsel %vm124, %v108, %v111
    %v129 = vsel %vm127, %v117, 2102212464
    %v130 = vsel %vm126, %v114, %v129
    %v131 = vsel %vm125, %v128, %v130
    %v132 = vsel %vm124, %v111, %v114
    %v133 = vsel %vm127, %v120, 920167782
    %v134 = vsel %vm126, %v117, %v133
    %v135 = vsel %vm125, %v132, %v134
    %v136 = vsel %vm124, %v114, %v117
    %v137 = vsel %vm127, %v123, 1326507024
    %v138 = vsel %vm126, %v120, %v137
    %v139 = vsel %vm125, %v136, %v138
    %v140 = vshll.u32 %v100, 8
    %v141 = vmul.u32.u64.compose %v140, %v139
    %v142 = vextract.low.u32 %v141
    %v143 = vextract.high.u32 %v141
    %v144 = vmul.u32.u64.compose %v140, %v135
    %v145 = vextract.low.u32 %v144
    %v146 = vextract.high.u32 %v144
    %v147 = vmul.u32 %v140, %v131
    %v148 = vadd.s32 %v143, %v145
    %vm149 = vc.u32 %v143, %v145
    %v150 = vadd.s32 %v146, 1
    %v151 = vsel %vm149, %v150, %v146
    %v152 = vadd.s32 %v147, %v151
    %v153 = vadd.s32 %v152, 536870912
    %v154 = vshrl.u32 %v153, 30
    %v155 = vshll.u32 %v154, 30
    %v156 = vsub.s32 %v152, %v155
    %vm157 = vcmp.lt.s32.totalorder %v156, 0
    %v158 = vsub.s32 0, %v156
    %v159 = vsel %vm157, %v158, %v156
    %v160 = vclz %v159
    %v161 = vsub.s32 %v160, 2
    %vm162 = vcmp.gt.s32.totalorder 0, %v161
    %v163 = vsel %vm162, 0, %v161
    %v164 = vsub.s32 32, %v163
    %v165 = vshll.u32 %v156, %v163
    %v166 = vshrl.u32 %v148, %v164
    %v167 = vor.u32 %v165, %v166
    %v168 = vsub.s32 4294967266, %v163
    %v169 = vadd.s32 %v168, 127
    %v170 = vshll.u32 %v169, 23
    %v171 = vor.u32 4788187, %v170
    %v172 = vand.u32 2147483647, %v171
    %v174 = vcvt.s32.f32 %v167
    %v175 = vmul.f32 %v174, %v172
    %v176 = vxor.u32 %v175, 2147483648
    %v177 = vsel %vm94, %v176, %v175
    %v178 = vsub.s32 4, %v154
    %v179 = vsel %vm94, %v178, %v154
    %v180 = vsel %vm93, %v91, %v177
    %v181 = vsel %vm93, 0, %v179
    %v182 = vcosq.f32.pop %v180
    %v183 = vsinq.f32.pop %v180
    %vm184 = vweird.f32 %v91
    %v185 = vadd.s32 %v181, 3
    %v186 = vand.u32 %v185, 3
    %vm187 = vcmp.lt.s32.totalorder %v186, 2
    %vm188 = vcmp.eq.s32.totalorder %v186, 0
    %v189 = vxor.u32 %v183, 2147483648
    %v190 = vsel %vm188, %v182, %v189
    %vm191 = vcmp.eq.s32.totalorder %v186, 2
    %v192 = vxor.u32 %v182, 2147483648
    %v193 = vsel %vm191, %v192, %v183
    %v194 = vsel %vm187, %v190, %v193
    %v195 = vsel %vm184, nan, %v194
    %196 = vst [vmem:[#allocation7] sm:$0x3] %v195
    // Predicated region
    $region22: #{tpu_custom_call.1} parent=1 // pred_check
      _
    $region23: #{tpu_custom_call.1} parent=1 // pred_check_branch
      %198 = sbr.rel (0) target = $region25
    $region24: #{tpu_custom_call.1} parent=1 // pred_region
      %s200 = ssub.s32 32, 32
      %201 = vsyncadd [#allocation4], %s200
      %s203 = sshll.u32 [#allocation7], 4
      %s204 = int_to_ptr.vmem [resolvable:$true] %s203
      %206 = dma.vmem_to_hbm [thread:$0]  %s204, 32, %s3, [#allocation4]
    $region25: #{tpu_custom_call.1} parent=1 // pred_fallthru
      _
    // Predicated region
    $region26: #{tpu_custom_call.1} parent=1 // pred_check
      _
    $region27: #{tpu_custom_call.1} parent=1 // pred_check_branch
      %208 = sbr.rel (0) target = $region29
    $region28: #{tpu_custom_call.1} parent=1 // pred_region
      %209 = dma.done [#allocation4], 32
    $region29: #{tpu_custom_call.1} parent=1 // pred_fallthru
      _
    %210 = vsyncpa [#allocation3], 1
    %211 = vsyncpa [#allocation6], 1
    %212 = vsyncpa [#allocation4], 1

</llo_original>
